<compile_context>
chip_gen: v7x
topology: tpu7x:2x2x1
jax: 0.10.0
libtpu: 0.0.40
codegen_flags: <defaults>
</compile_context>

<pallas_src>
import math

import jax
import jax.numpy as jnp
from jax.experimental import pallas as pl
from jax.experimental.pallas import tpu as pltpu


def _round_up(a, b):
    return ((a + b - 1) // b) * b


def _vmem_budget_bytes():
    """Usable per-core VMEM budget: 3/4 of capacity (v5e/v6e ~96 MiB, v7x ~48 MiB)."""
    cap = 64 << 20  # conservative fallback = v7x per-TC capacity
    try:
        info = pltpu.get_tpu_info()
        cap = int(getattr(info, "vmem_capacity_bytes", cap)) or cap
    except Exception:
        pass
    return (cap * 3) // 4


def countsketch_kernel(x_ref, m_ref, o_ref):
    """(tile_n, K) row slab @ (K, tile_o) sketch slice -> (tile_n, tile_o).

    x is cast to the sketch dtype on the VPU (hidden under the MXU); the
    accumulation is always f32 via preferred_element_type.
    """
    a = x_ref[...].astype(m_ref.dtype)
    o_ref[...] = jnp.dot(
        a, m_ref[...], preferred_element_type=jnp.float32
    ).astype(o_ref.dtype)


def make_sketch_matrix(h, s, output_size, dtype=jnp.bfloat16, lane=128):
    """Signed one-hot sketch M[i, j] = s[i]*(h[i]==j); columns padded to a lane multiple."""
    out_pad = _round_up(output_size, lane)
    cols = jnp.arange(out_pad, dtype=jnp.int32)  # padded cols never match h < output_size
    return jnp.where(
        h.astype(jnp.int32)[:, None] == cols[None, :],
        s[:, None].astype(dtype),
        jnp.zeros((), dtype),
    )


def _choose_tiles(N, K, Op, x_bytes, m_bytes, out_bytes, tile_n, tile_o, row_align, budget):
    """Pick (mode, tile_n, tile_o, vmem_need) that fits the per-generation VMEM budget."""
    n_cap = _round_up(N, row_align)
    tn_cands = sorted(
        {min(t, n_cap) for t in (tile_n, 512, 256, 128, 64, 32, 16, row_align)
         if t % row_align == 0},
        reverse=True,
    )
    to_cands = sorted(
        {min(t, Op) for t in (tile_o, 4096, 2048, 1024, 512, 256, 128)},
        reverse=True,
    )

    # Mode A (single pass): whole M resident once; x/out double-buffered row tiles.
    for tn in tn_cands:
        need = K * Op * m_bytes + 2 * tn * (K * x_bytes + Op * out_bytes)
        if need <= budget:
            return "single", tn, Op, need

    # Mode B (tiled): everything double-buffered; prefer large tile_o (fewer x re-reads).
    for to in to_cands:
        for tn in tn_cands:
            need = 2 * (tn * K * x_bytes + K * to * m_bytes + tn * to * out_bytes)
            if need <= budget:
                return "tiled", tn, to, need

    # Fallback: smallest tiles even if over budget (let Mosaic try).
    tn, to = tn_cands[-1], to_cands[-1]
    need = 2 * (tn * K * x_bytes + K * to * m_bytes + tn * to * out_bytes)
    return "tiled", tn, to, need


def count_sketch_apply(x, sketch_matrix, output_size, *, tile_n=512, tile_o=2048):
    """Pallas CountSketch forward.  x: (..., input_size) -> (..., output_size)."""
    orig_shape = x.shape
    K = orig_shape[-1]
    K_m, Op = sketch_matrix.shape
    assert K_m == K, (K_m, K)
    N = int(math.prod(orig_shape[:-1]))
    x2 = x.reshape(N, K)

    out_dtype = x.dtype
    x_bytes = jnp.dtype(x2.dtype).itemsize
    m_bytes = jnp.dtype(sketch_matrix.dtype).itemsize
    out_bytes = jnp.dtype(out_dtype).itemsize
    # bf16 packs 16 rows per sublane group; keep row tiles 16-aligned in that case.
    row_align = 16 if sketch_matrix.dtype == jnp.bfloat16 else 8

    budget = _vmem_budget_bytes()
    mode, tn, to, need = _choose_tiles(
        N, K, Op, x_bytes, m_bytes, out_bytes, tile_n, tile_o, row_align, budget
    )
    # Never clamp the limit below the actual requirement; never ask for full VMEM.
    vmem_limit = int(min(max(need + (4 << 20), 32 << 20), budget))
    vmem_limit = int(max(vmem_limit, need + (1 << 20)))

    if mode == "single":
        # x and M are each DMA'd from HBM exactly once.
        grid = (pl.cdiv(N, tn),)
        in_specs = [
            pl.BlockSpec((tn, K), lambda i: (i, 0)),            # x row tile (pipelined)
            pl.BlockSpec(memory_space=pltpu.MemorySpace.VMEM),   # whole M, single copy
        ]
        out_specs = pl.BlockSpec((tn, Op), lambda i: (i, 0))
        dims = ("parallel",)
        x_reads = 1
    else:
        grid = (pl.cdiv(Op, to), pl.cdiv(N, tn))  # O outer, rows inner
        in_specs = [
            pl.BlockSpec((tn, K), lambda j, i: (i, 0)),   # x row tile
            pl.BlockSpec((K, to), lambda j, i: (0, j)),   # M slice, resident over the row sweep
        ]
        out_specs = pl.BlockSpec((tn, to), lambda j, i: (i, j))
        # Row axis "arbitrary" so a 2-TC (v7x) split lands on the O axis:
        # each core streams a disjoint half of M instead of duplicating it.
        dims = ("parallel", "arbitrary")
        x_reads = pl.cdiv(Op, to)

    out = pl.pallas_call(
        countsketch_kernel,
        out_shape=jax.ShapeDtypeStruct((N, Op), out_dtype),
        grid=grid,
        in_specs=in_specs,
        out_specs=out_specs,
        compiler_params=pltpu.CompilerParams(
            dimension_semantics=dims,
            vmem_limit_bytes=vmem_limit,
        ),
        cost_estimate=pl.CostEstimate(
            flops=2 * N * K * Op,
            transcendentals=0,
            bytes_accessed=x_reads * N * K * x_bytes
            + K * Op * m_bytes
            + N * Op * out_bytes,
        ),
    )(x2, sketch_matrix)

    if Op != output_size:
        out = out[:, :output_size]
    return out.reshape(orig_shape[:-1] + (output_size,))


class CountSketch:
    """JAX/Pallas port of the PyTorch CountSketch module (forward only)."""

    def __init__(self, input_size, output_size, key=None, h=None, s=None,
                 compute_dtype=jnp.bfloat16):
        self.input_size = input_size
        self.output_size = output_size
        if h is None or s is None:
            assert key is not None, "need a PRNG key when h/s are not given"
            k_h, k_s = jax.random.split(key)
            if h is None:
                # h ~ uniform ints in [0, output_size)
                h = jax.random.randint(k_h, (input_size,), 0, output_size, dtype=jnp.int32)
            if s is None:
                # s ~ uniform in {-1, +1}
                s = (2 * jax.random.randint(k_s, (input_size,), 0, 2) - 1).astype(jnp.float32)
        self.h = h
        self.s = s
        # h, s are fixed buffers -> build the signed one-hot projection once
        # (hoisted out of the kernel).  bf16 is exact for {0, +1, -1}.
        self.sketch = make_sketch_matrix(self.h, self.s, output_size, dtype=compute_dtype)

    def __call__(self, x):
        assert x.shape[-1] == self.input_size
        return count_sketch_apply(x, self.sketch, self.output_size)


def count_sketch_ref(x, h, s, output_size):
    """Pure-JAX reference (scatter-add, same semantics as torch scatter_add_)."""
    xs = x * s.astype(x.dtype)
    out = jnp.zeros(x.shape[:-1] + (output_size,), dtype=x.dtype)
    return out.at[..., h].add(xs)


if __name__ == "__main__":
    key = jax.random.PRNGKey(0)
    k_param, k_x = jax.random.split(key)

    batch, seq, input_size, output_size = 2, 8, 32, 64
    x = jax.random.normal(k_x, (batch, seq, input_size), dtype=jnp.float32)

    # Default (bf16 sketch) path: M entries 0/±1 exact, x cast in-kernel, f32 accumulation.
    module = CountSketch(input_size, output_size, k_param)
    out = jax.block_until_ready(module(x))
    ref = count_sketch_ref(x, module.h, module.s, output_size)
    assert out.shape == (batch, seq, output_size), out.shape
    assert jnp.allclose(out, ref, atol=5e-2, rtol=5e-2), "bf16 mismatch vs reference"

    # Full-precision path (compute_dtype=f32): bit-faithful activations.
    module_f32 = CountSketch(input_size, output_size, k_param, compute_dtype=jnp.float32)
    out_f32 = jax.block_until_ready(module_f32(x))
    assert out_f32.shape == (batch, seq, output_size)
    assert jnp.allclose(out_f32, ref, atol=1e-5, rtol=1e-5), "f32 mismatch vs reference"

    print("KERNEL_OK")
</pallas_src>

<mosaic_0001>
module attributes {stable_mosaic.version = 11 : i64} {
  func.func @countsketch_kernel(%arg0: i32, %arg1: memref<16x32xf32, #tpu.memory_space<vmem>>, %arg2: memref<32x128xbf16, #tpu.memory_space<vmem>>, %arg3: memref<16x128xf32, #tpu.memory_space<vmem>>) attributes {dimension_semantics = [#tpu.dimension_semantics<parallel>], iteration_bounds = array<i64: 1>, scalar_prefetch = 0 : i64, scratch_operands = 0 : i64, tpu.core_type = #tpu.core_type<tc>, window_params = [{transform_indices = @transform_0, window_bounds = array<i64: 16, 32>}, {pipeline_mode = #tpu.pipeline_mode<synchronous>, transform_indices = @transform_1, window_bounds = array<i64: 32, 128>}, {transform_indices = @transform_2, window_bounds = array<i64: 16, 128>}]} {
    %c0 = arith.constant 0 : index
    %c0_0 = arith.constant 0 : index
    %0 = vector.load %arg1[%c0, %c0_0] : memref<16x32xf32, #tpu.memory_space<vmem>>, vector<16x32xf32>
    %1 = arith.truncf %0 : vector<16x32xf32> to vector<16x32xbf16>
    %c0_1 = arith.constant 0 : index
    %c0_2 = arith.constant 0 : index
    %2 = vector.load %arg2[%c0_1, %c0_2] : memref<32x128xbf16, #tpu.memory_space<vmem>>, vector<32x128xbf16>
    %cst = arith.constant dense<0.000000e+00> : vector<16x128xf32>
    %3 = tpu.matmul %1, %2, %cst {dimension_numbers = #tpu.dot_dimension_numbers<[1], [0], [0], [1], [0, 0, 1, 1], [], []>} : vector<16x32xbf16>, vector<32x128xbf16>, vector<16x128xf32> -> vector<16x128xf32>
    %c0_3 = arith.constant 0 : index
    %c0_4 = arith.constant 0 : index
    %4 = vector.load %arg3[%c0_3, %c0_4] : memref<16x128xf32, #tpu.memory_space<vmem>>, vector<16x128xf32>
    tpu.vector_store %arg3[%c0_3, %c0_4], %3 {strides = array<i32>} : memref<16x128xf32, #tpu.memory_space<vmem>>, vector<16x128xf32>,
    return
  }
  func.func @transform_0(%arg0: i32) -> (i32, i32) {
    %c0_i32 = arith.constant 0 : i32
    %c0_i32_0 = arith.constant 0 : i32
    return %arg0, %c0_i32 : i32, i32
  }
  func.func @transform_1(%arg0: i32) -> (i32, i32) {
    %c0_i32 = arith.constant 0 : i32
    %c0_i32_0 = arith.constant 0 : i32
    %c0_i32_1 = arith.constant 0 : i32
    return %c0_i32, %c0_i32_0 : i32, i32
  }
  func.func @transform_2(%arg0: i32) -> (i32, i32) {
    %c0_i32 = arith.constant 0 : i32
    %c0_i32_0 = arith.constant 0 : i32
    return %arg0, %c0_i32 : i32, i32
  }
}

</mosaic_0001>

<llo_original>
// kernel: tpu_custom_call.1
$region0: #{tpu_custom_call.1}
  #allocation0 [shape = 'u32[]', space=smem, size = 0x4, offset = 0x4, fixed_abs, tag = 'smem constant byte address 0x4 - core index']
  #allocation1 [shape = 'u32[144,128]{1,0:T(1,128)}', space=vmem, size = 0x12000, scoped, tag = 'internal scratch']
  %s0 = inlined_call_operand.hbm [shape: f32[16,32], index: 0, kind: input, shape index: {}]
  %s1 = inlined_call_operand.hbm [shape: bf16[32,128], index: 1, kind: input, shape index: {}]
  %s2 = inlined_call_operand.hbm [shape: f32[16,128], index: 2, kind: output, shape index: {}]
  %s3 = sld [smem:[#allocation0]]
  $region26: #{tpu_custom_call.1} parent=0
    _
  %s5 = ssub.s32 1, %s3
  %s6 = scalar_select 0, %s5, %s3
  $region1: #{tpu_custom_call.1} parent=0
    #allocation2 [shape = 'u8[8192]{0}', space=vmem, size = 0x2000, scoped, tag = 'input window, operand 0, single buffered']
    #allocation3 [shape = 's32[1]{0}', space=sflag, size = 0x4, scoped, tag = 'scoped memory for tpu_custom_call.1']
    #allocation4 [shape = 's32[1]{0}', space=sflag, size = 0x4, scoped, tag = 'scoped memory for tpu_custom_call.1']
    #allocation5 [shape = 'u8[8192]{0}', space=vmem, size = 0x2000, scoped, tag = 'input window, operand 1, single buffered']
    #allocation6 [shape = 's32[1]{0}', space=sflag, size = 0x4, scoped, tag = 'scoped memory for tpu_custom_call.1']
    #allocation7 [shape = 'u8[8192]{0}', space=vmem, size = 0x2000, scoped, tag = 'output window, operand 0, single buffered']
    %7 = vsyncpa [#allocation3], 0
    %8 = vsyncpa [#allocation6], 0
    %9 = vsyncpa [#allocation4], 0
    // Predicated region
    $region2: #{tpu_custom_call.1} parent=1 // pred_check
      _
    $region3: #{tpu_custom_call.1} parent=1 // pred_check_branch
      %11 = sbr.rel (0) target = $region5
    $region4: #{tpu_custom_call.1} parent=1 // pred_region
      %s13 = ssub.s32 256, 256
      %14 = vsyncadd [#allocation3], %s13
      %s15 = sshll.u32 [#allocation2], 4
      %s16 = int_to_ptr.vmem [resolvable:$true] %s15
      %21 = dma.hbm_to_vmem [thread:$0]  %s0, 256, %s16, [#allocation3], 128, 128, 8
    $region5: #{tpu_custom_call.1} parent=1 // pred_fallthru
      _
    // Predicated region
    $region6: #{tpu_custom_call.1} parent=1 // pred_check
      _
    $region7: #{tpu_custom_call.1} parent=1 // pred_check_branch
      %23 = sbr.rel (0) target = $region9
    $region8: #{tpu_custom_call.1} parent=1 // pred_region
      %s25 = ssub.s32 256, 256
      %26 = vsyncadd [#allocation6], %s25
      %s27 = sshll.u32 [#allocation5], 4
      %s28 = int_to_ptr.vmem [resolvable:$true] %s27
      %33 = dma.hbm_to_vmem [thread:$0]  %s1, 256, %s28, [#allocation6], 64, 64, 4
    $region9: #{tpu_custom_call.1} parent=1 // pred_fallthru
      _
    // Predicated region
    $region10: #{tpu_custom_call.1} parent=1 // pred_check
      _
    $region11: #{tpu_custom_call.1} parent=1 // pred_check_branch
      %35 = sbr.rel (0) target = $region13
    $region12: #{tpu_custom_call.1} parent=1 // pred_region
      %36 = dma.done [#allocation3], 256
    $region13: #{tpu_custom_call.1} parent=1 // pred_fallthru
      _
    // Predicated region
    $region14: #{tpu_custom_call.1} parent=1 // pred_check
      _
    $region15: #{tpu_custom_call.1} parent=1 // pred_check_branch
      %38 = sbr.rel (0) target = $region17
    $region16: #{tpu_custom_call.1} parent=1 // pred_region
      %39 = dma.done [#allocation6], 256
    $region17: #{tpu_custom_call.1} parent=1 // pred_fallthru
      _
    %v41 = vld [vmem:[#allocation2] sm:$0xff]
    %v42 = vld [vmem:[#allocation2 + $0x8] sm:$0xff]
    %v43 = vpack.c.bf16 %v42, %v41
    %v44 = vld [vmem:[#allocation5] sm:$0xf]
    %v45 = vld [vmem:[#allocation5 + $0x4] sm:$0xf]
    %v46 = vld [vmem:[#allocation5 + $0x8] sm:$0xf]
    %v47 = vld [vmem:[#allocation5 + $0xc] sm:$0xf]
    %v52 = vunpack.c.l.b16 %v44
    %v53 = vunpack.c.l.b16 %v45
    %v54 = vunpack.c.l.b16 %v46
    %v55 = vunpack.c.l.b16 %v47
    %v56 = vpack.c.b16 %v53, %v52
    %v57 = vpack.c.b16 %v55, %v54
    %vm60 = vcmask 261120
    %v62 = vsel %vm60, %v43, 0
    %64 = vmatprep.subr.bf16.mxu0 0
    %65 = vmatpush1.bf16.msra.mxu0 %v56
    %66 = vmatprep.subr.bf16.mxu0 0
    %67 = vmatpush1.bf16.msra.mxu0 %v57
    %68 = vmatprep.subr.bf16.mxu0 0
    %69 = vmatpush1.bf16.msra.mxu0 0
    %70 = vmatprep.subr.bf16.mxu0 0
    %71 = vmatpush1.bf16.msra.mxu0 0
    %72 = vmatprep.subr.bf16.mxu0 0
    %73 = vmatpush1.bf16.msra.mxu0 0
    %74 = vmatprep.subr.bf16.mxu0 0
    %75 = vmatpush1.bf16.msra.mxu0 0
    %76 = vmatprep.subr.bf16.mxu0 0
    %77 = vmatpush1.bf16.msra.mxu0 0
    %78 = vmatprep.subr.bf16.mxu0 0
    %79 = vmatpush1.bf16.msra.mxu0 0
    %80 = vmatprep.subr.bf16.mxu0 0
    %81 = vmatpush1.bf16.msra.mxu0 0
    %82 = vmatprep.subr.bf16.mxu0 0
    %83 = vmatpush1.bf16.msra.mxu0 0
    %84 = vmatprep.subr.bf16.mxu0 0
    %85 = vmatpush1.bf16.msra.mxu0 0
    %86 = vmatprep.subr.bf16.mxu0 0
    %87 = vmatpush1.bf16.msra.mxu0 0
    %88 = vmatprep.subr.bf16.mxu0 0
    %89 = vmatpush1.bf16.msra.mxu0 0
    %90 = vmatprep.subr.bf16.mxu0 0
    %91 = vmatpush1.bf16.msra.mxu0 0
    %92 = vmatprep.subr.bf16.mxu0 0
    %93 = vmatpush1.bf16.msra.mxu0 0
    %94 = vmatprep.subr.bf16.mxu0 0
    %95 = vmatpush1.bf16.msra.mxu0 0
    %96 = vmatprep.mubr.bf16.mxu0 0
    %97 = vmatmul.mubr.bf16.gmra.mrb[0].mxu0 %v62
    %v98 = vpop.f32.mrb[0].mxu0
    %v99 = vadd.f32 0.0, %v98
    %v100 = vpop.f32.mrb[0].mxu0
    %v101 = vpop.f32.mrb[0].mxu0
    %v102 = vadd.f32 0.0, %v101
    %v103 = vpop.f32.mrb[0].mxu0
    %104 = vdwg.mxu0
    %105 = vst [vmem:[#allocation7] sm:$0xff] %v99
    %106 = vst [vmem:[#allocation7 + $0x8] sm:$0xff] %v102
    // Predicated region
    $region18: #{tpu_custom_call.1} parent=1 // pred_check
      _
    $region19: #{tpu_custom_call.1} parent=1 // pred_check_branch
      %108 = sbr.rel (0) target = $region21
    $region20: #{tpu_custom_call.1} parent=1 // pred_region
      %s110 = ssub.s32 256, 256
      %111 = vsyncadd [#allocation4], %s110
      %s112 = sshll.u32 [#allocation7], 4
      %s113 = int_to_ptr.vmem [resolvable:$true] %s112
      %118 = dma.vmem_to_hbm [thread:$0]  %s113, 256, %s2, [#allocation4], 128, 128, 8
    $region21: #{tpu_custom_call.1} parent=1 // pred_fallthru
      _
    // Predicated region
    $region22: #{tpu_custom_call.1} parent=1 // pred_check
      _
    $region23: #{tpu_custom_call.1} parent=1 // pred_check_branch
      %120 = sbr.rel (0) target = $region25
    $region24: #{tpu_custom_call.1} parent=1 // pred_region
      %121 = dma.done [#allocation4], 256
    $region25: #{tpu_custom_call.1} parent=1 // pred_fallthru
      _
    %122 = vsyncpa [#allocation3], 1
    %123 = vsyncpa [#allocation6], 1
    %124 = vsyncpa [#allocation4], 1

</llo_original>
